<compile_context>
chip_gen: v6e
topology: v6e:2x2x1
jax: 0.10.0
libtpu: 0.0.40
codegen_flags: <defaults>
</compile_context>

<pallas_src>
import functools

import jax
import jax.numpy as jnp
from jax import lax
from jax.experimental import pallas as pl
from jax.experimental.pallas import tpu as pltpu


# ----------------------------- kernels --------------------------------------

def _ising_kernel(act_ref, x_ref, o_ref):
    """Flip spins sequentially: y[r, flat == act[r, i]] = 1 - y, i = 0..K-1."""
    cols = lax.broadcasted_iota(jnp.int32, x_ref.shape, 1)   # (TB, N)
    acts = act_ref[...]                                      # (TB, K) int32
    y = x_ref[...]
    K = acts.shape[-1]
    for i in range(K):                                       # K is tiny/static
        a = acts[:, i:i + 1]                                 # (TB, 1)
        y = jnp.where(cols == a, 1.0 - y, y)
    o_ref[...] = y.astype(o_ref.dtype)


def _hop_kernel(L, act_ref, x_ref, o_ref):
    """Particle hop: sequentially flip spins at (l, m) and its neighbor."""
    cols = lax.broadcasted_iota(jnp.int32, x_ref.shape, 1)   # (TB, L*L)
    a = act_ref[...]                                         # (TB, 1) int32
    m = a % L
    l = (a // L) % L
    d = a // (L * L)                  # direction: 0 -> (-1, 0), 1 -> (0, 1)
    dl = jnp.where(d == 0, -1, 0)
    dm = jnp.where(d == 0, 0, 1)
    l2 = (l + dl) % L                 # floor-mod == torch.fmod + negative wrap
    m2 = (m + dm) % L
    idx1 = l * L + m
    idx2 = l2 * L + m2
    y = x_ref[...]
    # Two sequential flips (not an OR mask) so idx1 == idx2 (L == 1) cancels,
    # exactly like the sequential in-place updates in the PyTorch reference.
    y = jnp.where(cols == idx1, 1.0 - y, y)
    y = jnp.where(cols == idx2, 1.0 - y, y)
    o_ref[...] = y.astype(o_ref.dtype)
    # TODO(synk): PyTorch raises ValueError('negative rates') at runtime; a
    #             data-dependent host exception has no clean TPU equivalent.


# ----------------------------- wrapper ---------------------------------------

def _choose_batch_tile(B, row_bytes):
    """Biggest batch tile whose in/out blocks stay well inside scoped VMEM."""
    budget_per_block = 4 * 1024 * 1024   # safe on v5e/v6e (32/128 MiB) and v7x (32/64 MiB)
    max_rows = max(1, budget_per_block // max(1, row_bytes))
    if B <= max_rows:
        return B                          # whole batch in one grid step
    return max(8, (max_rows // 8) * 8)    # keep (8,128) divisibility on sublanes


def _markov_step(state, action, *, ising, k=1):
    B = state.shape[0]
    H, W = state.shape[-2:]
    N = H * W
    flat = state.reshape(B, N)            # lane-dense last dim (multiple of 128 for L>=16)

    acts = jnp.asarray(action, dtype=jnp.int32)
    if acts.ndim == 1:
        acts = acts[:, None]
    if ising:
        if k > acts.shape[1]:
            raise ValueError(f"k={k} but action has only {acts.shape[1]} column(s)")
        acts = acts[:, :k]
    else:
        acts = acts[:, :1]
    K = acts.shape[1]

    TB = _choose_batch_tile(B, N * flat.dtype.itemsize)
    grid = (pl.cdiv(B, TB),)

    kernel = _ising_kernel if ising else functools.partial(_hop_kernel, W)

    out = pl.pallas_call(
        kernel,
        out_shape=jax.ShapeDtypeStruct((B, N), flat.dtype),
        grid_spec=pl.GridSpec(
            grid=grid,
            in_specs=[
                pl.BlockSpec((TB, K), lambda i: (i, 0)),   # per-row actions (VMEM)
                pl.BlockSpec((TB, N), lambda i: (i, 0)),   # flattened state
            ],
            out_specs=pl.BlockSpec((TB, N), lambda i: (i, 0)),
        ),
        compiler_params=pltpu.CompilerParams(dimension_semantics=("parallel",)),
    )(acts, flat)
    return out.reshape(state.shape)


class MarkovChainPallas:
    """Pallas equivalent of MarkovChain (one discrete-time Markov step)."""

    def __init__(self, potential: str):
        self.ising = potential.startswith("ising")
        if self.ising:
            self.out_channels = 1
        elif potential.startswith("j1"):
            self.out_channels = 4
        else:
            self.out_channels = 2

    def __call__(self, state, action, k=1):
        if self.ising:
            return _markov_step(state, action, ising=True, k=k)
        if self.out_channels != 2:
            # TODO(synk): PyTorch's make_particle_hop only defines the hop sites
            # when out_channels == 2; the 4-channel 'j1' path crashes upstream
            # too, so there are no faithful semantics to translate.
            raise NotImplementedError("particle hop only defined for out_channels == 2")
        return _markov_step(state, action, ising=False)


# ----------------------------- reference (pure JAX) ---------------------------

def _ref_ising(state, action):
    B = state.shape[0]
    flat = state.reshape(B, -1)
    idx = jnp.arange(B)
    flat = flat.at[idx, action].set(1.0 - flat[idx, action])
    return flat.reshape(state.shape)


def _ref_hop(state, action):
    B, H, W = state.shape
    L = W
    m = action % L
    l = (action // L) % L
    d = action // (L * L)
    dl = jnp.where(d == 0, -1, 0)
    dm = jnp.where(d == 0, 0, 1)
    l2 = (l + dl) % L
    m2 = (m + dm) % L
    idx = jnp.arange(B)
    y = state.at[idx, l, m].set(1.0 - state[idx, l, m])
    y = y.at[idx, l2, m2].set(1.0 - y[idx, l2, m2])
    return y


# ----------------------------- main -------------------------------------------

if __name__ == "__main__":
    key = jax.random.PRNGKey(0)
    B, L = 2, 16
    k_state, k_act1, k_act2 = jax.random.split(key, 3)

    # binary lattice state (non-negative "rates"), shape (B, L, L)
    state = jax.random.bernoulli(k_state, 0.5, (B, L, L)).astype(jnp.float32)

    # Ising path: action is a flat spin index in [0, L*L)
    ising_action = jax.random.randint(k_act1, (B,), 0, L * L, dtype=jnp.int32)
    mc_ising = MarkovChainPallas("ising_2d")
    out_ising = jax.block_until_ready(mc_ising(state, ising_action))
    ref_ising = _ref_ising(state, ising_action)

    # Particle-hop path (out_channels=2): action in [0, 2*L*L)
    hop_action = jax.random.randint(k_act2, (B,), 0, 2 * L * L, dtype=jnp.int32)
    mc_hop = MarkovChainPallas("asep")
    out_hop = jax.block_until_ready(mc_hop(state, hop_action))
    ref_hop = _ref_hop(state, hop_action)

    assert out_ising.shape == state.shape and out_ising.dtype == state.dtype
    assert out_hop.shape == state.shape and out_hop.dtype == state.dtype
    assert jnp.allclose(out_ising, ref_ising), "ising path mismatch"
    assert jnp.allclose(out_hop, ref_hop), "particle-hop path mismatch"

    print("KERNEL_OK")
</pallas_src>

<mosaic_0001>
module attributes {stable_mosaic.version = 11 : i64} {
  func.func @_ising_kernel(%arg0: i32, %arg1: memref<2x1xi32, #tpu.memory_space<vmem>>, %arg2: memref<2x256xf32, #tpu.memory_space<vmem>>, %arg3: memref<2x256xf32, #tpu.memory_space<vmem>>) attributes {dimension_semantics = [#tpu.dimension_semantics<parallel>], iteration_bounds = array<i64: 1>, scalar_prefetch = 0 : i64, scratch_operands = 0 : i64, tpu.core_type = #tpu.core_type<tc>, window_params = [{transform_indices = @transform_0, window_bounds = array<i64: 2, 1>}, {transform_indices = @transform_1, window_bounds = array<i64: 2, 256>}, {transform_indices = @transform_2, window_bounds = array<i64: 2, 256>}]} {
    %0 = tpu.iota {dimensions = array<i32: 1>} : vector<2x256xi32>
    %c0 = arith.constant 0 : index
    %c0_0 = arith.constant 0 : index
    %1 = vector.load %arg1[%c0, %c0_0] : memref<2x1xi32, #tpu.memory_space<vmem>>, vector<2x1xi32>
    %c0_1 = arith.constant 0 : index
    %c0_2 = arith.constant 0 : index
    %2 = vector.load %arg2[%c0_1, %c0_2] : memref<2x256xf32, #tpu.memory_space<vmem>>, vector<2x256xf32>
    %3 = vector.broadcast %1 : vector<2x1xi32> to vector<2x256xi32>
    %4 = arith.cmpi eq, %0, %3 : vector<2x256xi32>
    %cst = arith.constant 1.000000e+00 : f32
    %5 = vector.broadcast %cst : f32 to vector<2x256xf32>
    %6 = arith.subf %5, %2 : vector<2x256xf32>
    %7 = arith.select %4, %6, %2 : vector<2x256xi1>, vector<2x256xf32>
    %c0_3 = arith.constant 0 : index
    %c0_4 = arith.constant 0 : index
    %8 = vector.load %arg3[%c0_3, %c0_4] : memref<2x256xf32, #tpu.memory_space<vmem>>, vector<2x256xf32>
    tpu.vector_store %arg3[%c0_3, %c0_4], %7 {strides = array<i32>} : memref<2x256xf32, #tpu.memory_space<vmem>>, vector<2x256xf32>,
    return
  }
  func.func @transform_0(%arg0: i32) -> (i32, i32) {
    %c0_i32 = arith.constant 0 : i32
    %c0_i32_0 = arith.constant 0 : i32
    return %arg0, %c0_i32 : i32, i32
  }
  func.func @transform_1(%arg0: i32) -> (i32, i32) {
    %c0_i32 = arith.constant 0 : i32
    %c0_i32_0 = arith.constant 0 : i32
    return %arg0, %c0_i32 : i32, i32
  }
  func.func @transform_2(%arg0: i32) -> (i32, i32) {
    %c0_i32 = arith.constant 0 : i32
    %c0_i32_0 = arith.constant 0 : i32
    return %arg0, %c0_i32 : i32, i32
  }
}

</mosaic_0001>

<llo_original>
// kernel: tpu_custom_call.1
$region0: #{tpu_custom_call.1}
  #allocation0 [shape = 'u32[]', space=smem, size = 0x4, offset = 0x4, fixed_abs, tag = 'smem constant byte address 0x4 - core index']
  #allocation1 [shape = 'u32[144,128]{1,0:T(1,128)}', space=vmem, size = 0x12000, scoped, tag = 'internal scratch']
  %s0 = inlined_call_operand.vmem [shape: s32[2,1], index: 0, kind: input, shape index: {}]
  %s1 = inlined_call_operand.vmem [shape: f32[2,256], index: 1, kind: input, shape index: {}]
  %s2 = inlined_call_operand.hbm [shape: f32[2,256], index: 2, kind: output, shape index: {}]
  %s3 = sld [smem:[#allocation0]]
  $region18: #{tpu_custom_call.1} parent=0
    _
  %s5 = ssub.s32 1, %s3
  %s6 = scalar_select 0, %s5, %s3
  $region1: #{tpu_custom_call.1} parent=0
    #allocation2 [shape = 'u8[2048]{0}', space=vmem, size = 0x800, scoped, tag = 'output window, operand 0, single buffered']
    #allocation3 [shape = 's32[1]{0}', space=sflag, size = 0x4, scoped, tag = 'scoped memory for tpu_custom_call.1']
    %7 = vsyncpa [#allocation3], 0
    // Predicated region
    $region2: #{tpu_custom_call.1} parent=1 // pred_check
      _
    $region3: #{tpu_custom_call.1} parent=1 // pred_check_branch
      %9 = sbr.rel (0) target = $region5
    $region4: #{tpu_custom_call.1} parent=1 // pred_region
      _
    $region5: #{tpu_custom_call.1} parent=1 // pred_fallthru
      _
    // Predicated region
    $region6: #{tpu_custom_call.1} parent=1 // pred_check
      _
    $region7: #{tpu_custom_call.1} parent=1 // pred_check_branch
      %11 = sbr.rel (0) target = $region9
    $region8: #{tpu_custom_call.1} parent=1 // pred_region
      _
    $region9: #{tpu_custom_call.1} parent=1 // pred_fallthru
      _
    %v12 = vlaneseq
    %v13 = vand.u32 %v12, 127
    %v14 = vadd.s32 %v13, 128
    %v15 = vld [vmem:[%s0] sm:$0x3]
    %v16 = vld [vmem:[%s1] sm:$0xf]
    %17 = vset.pattern.permute.xlu0 0
    %18 = vperm.xlu0 %17, %v15
    %v19 = vpop.permute.xlu0 %18
    %vm20 = vcmp.eq.s32.totalorder %v13, %v19
    %vm21 = vcmp.eq.s32.totalorder %v14, %v19
    %v22 = vsub.f32 1.0, %v16
    %v25 = vunpack.c.l.s4 1983009808
    %v26 = vunpack.c.0.s8 %v25
    %v27 = vlaneseq
    %v28 = vshrl.u32 %v27, 7
    %v29 = vsub.s32 %v26, %v28
    %v30 = vrot.slane %v22, %v29
    %v31 = vcombine.high %v30, %v30
    %v36 = vunpack.c.l.s4 1983009808
    %v37 = vunpack.c.0.s8 %v36
    %v38 = vlaneseq
    %v39 = vshrl.u32 %v38, 7
    %v40 = vsub.s32 %v37, %v39
    %v41 = vrot.slane %v16, %v40
    %v42 = vcombine.high %v41, %v41
    %v45 = vsel %vm20, %v30, %v41
    %v46 = vsel %vm21, %v31, %v42
    %v49 = vcombine.low %v45, %v46
    %v51 = vunpack.c.l.s4 1983009808
    %v52 = vunpack.c.0.s8 %v51
    %v53 = vlaneseq
    %v54 = vshrl.u32 %v53, 7
    %v55 = vsub.s32 %v52, %v54
    %v56 = vrot.slane %v49, %v55
    %58 = vst [vmem:[#allocation2] sm:$0xf] %v56
    // Predicated region
    $region10: #{tpu_custom_call.1} parent=1 // pred_check
      _
    $region11: #{tpu_custom_call.1} parent=1 // pred_check_branch
      %60 = sbr.rel (0) target = $region13
    $region12: #{tpu_custom_call.1} parent=1 // pred_region
      %s62 = ssub.s32 64, 64
      %63 = vsyncadd [#allocation3], %s62
      %s65 = sshll.u32 [#allocation2], 4
      %s66 = int_to_ptr.vmem [resolvable:$true] %s65
      %68 = dma.vmem_to_hbm [thread:$0]  %s66, 64, %s2, [#allocation3]
    $region13: #{tpu_custom_call.1} parent=1 // pred_fallthru
      _
    // Predicated region
    $region14: #{tpu_custom_call.1} parent=1 // pred_check
      _
    $region15: #{tpu_custom_call.1} parent=1 // pred_check_branch
      %70 = sbr.rel (0) target = $region17
    $region16: #{tpu_custom_call.1} parent=1 // pred_region
      %71 = dma.done [#allocation3], 64
    $region17: #{tpu_custom_call.1} parent=1 // pred_fallthru
      _
    %72 = vsyncpa [#allocation3], 1

</llo_original>
